<compile_context>
chip_gen: v5e
topology: v5e:2x2
jax: 0.10.0
libtpu: 0.0.40
codegen_flags: <defaults>
</compile_context>

<pallas_src>
import functools

import jax
import jax.numpy as jnp
from jax.experimental import pallas as pl
from jax.experimental.pallas import tpu as pltpu


# ------------------------------ fused kernel --------------------------------


def _asgc_net_kernel(a_hbm_ref, x_ref, w_in_ref, w_lyr_ref, w_out_ref,
                     out_ref, a_hat, h, h0, dma_sem):
    """Grid axis 0 = ASGC layer index. A_hat/h/h0 stay resident in VMEM."""
    layer = pl.program_id(0)

    # ---- one-time setup: stage normalized adjacency + input MLP (ReLU) ----
    @pl.when(layer == 0)
    def _setup():
        # Single HBM->VMEM DMA of the pre-normalized bf16 adjacency, overlapped
        # with the input-layer matmul below.
        cp = pltpu.make_async_copy(a_hbm_ref, a_hat, dma_sem)
        cp.start()

        # inLayer: h = relu(x @ W_in)   (bias=False, dropout=0 / inference)
        hin = jnp.dot(x_ref[...], w_in_ref[...],
                      preferred_element_type=jnp.float32)
        hin = jnp.maximum(hin, 0.0)
        h[...] = hin
        h0[...] = hin          # initial_features residual

        cp.wait()

    # ---- ASGC layer `layer`: h = A_hat @ (h @ W_l) + h0 (bf16 MXU, f32 acc) --
    hw = jnp.dot(h[...].astype(jnp.bfloat16), w_lyr_ref[0],
                 preferred_element_type=jnp.float32)
    agg = jnp.dot(a_hat[...], hw.astype(jnp.bfloat16),
                  preferred_element_type=jnp.float32)
    h[...] = agg + h0[...]

    # ---- finalize: output MLP (no activation), lane-dense f32 writeback ----
    @pl.when(layer == pl.num_programs(0) - 1)
    def _finish():
        out_ref[...] = jnp.dot(h[...].astype(jnp.bfloat16), w_out_ref[...],
                               preferred_element_type=jnp.float32
                               ).astype(out_ref.dtype)


# ------------------------------ host wrappers --------------------------------


def _round_up(x, m):
    return ((x + m - 1) // m) * m


def _pad_to(a, shape):
    pads = [(0, t - s) for s, t in zip(a.shape, shape)]
    return jnp.pad(a, pads)


def _normalize_adjacency(adj, graph_norm):
    adj = adj.astype(jnp.float32)
    if not graph_norm:
        return adj
    a = adj + jnp.eye(adj.shape[0], dtype=jnp.float32)          # A + I
    deg = jnp.sum(a, axis=1)
    dinv = jax.lax.rsqrt(jnp.maximum(deg, 1e-12))
    return a * dinv[:, None] * dinv[None, :]                    # D^-1/2 (A+I) D^-1/2


def asgc_net_forward(params, adj, features, *, graph_norm=True):
    """Mirrors ASGCNet.forward(graph, features) — one fused pallas_call."""
    n, f_dim = features.shape
    h_dim = params["w_in"].shape[1]
    c_dim = params["w_out"].shape[1]

    w_layers = params["w_layers"]
    num_layers = w_layers.shape[0]
    if num_layers == 0:
        # Zero-weight ASGC layer is an exact identity (h = A@0 + h0 = h0 = h),
        # keeps the grid non-empty without changing semantics.
        w_layers = jnp.zeros((1, h_dim, h_dim), jnp.float32)
        num_layers = 1

    # Host-side, one-shot normalization (removes iota/where/XLU work + the f32
    # A_hat materialization from the kernel).
    a_hat = _normalize_adjacency(adj, graph_norm)

    # Lane/sublane-dense padding of every dim to a multiple of 128. Zero padding
    # is exactly preserved through bias-free matmuls + ReLU, so no masking needed.
    # TODO(synk): on v6e/v7x prefer multiples of 256 for hp when h_dim > 128
    #             (2x256x256 MXU geometry); kept at 128 here for tiny dims.
    np_ = _round_up(n, 128)
    fp = _round_up(f_dim, 128)
    hp = _round_up(h_dim, 128)
    cp = _round_up(c_dim, 128)

    bf16 = jnp.bfloat16
    a_hat_p = _pad_to(a_hat, (np_, np_)).astype(bf16)
    x_p = _pad_to(features.astype(jnp.float32), (np_, fp)).astype(bf16)
    w_in_p = _pad_to(params["w_in"].astype(jnp.float32), (fp, hp)).astype(bf16)
    w_lyr_p = _pad_to(w_layers.astype(jnp.float32),
                      (num_layers, hp, hp)).astype(bf16)
    w_out_p = _pad_to(params["w_out"].astype(jnp.float32), (hp, cp)).astype(bf16)

    # Generation-aware VMEM limit: ~110 MiB on v5e/v6e (128 MiB physical),
    # ~56 MiB on v7x (64 MiB physical, leave headroom for internal scratch).
    try:
        vmem_cap = int(pltpu.get_tpu_info().vmem_capacity_bytes)
    except Exception:
        vmem_cap = 64 * 1024 * 1024
    vmem_limit = min(vmem_cap - 8 * 1024 * 1024, 110 * 1024 * 1024)

    out = pl.pallas_call(
        _asgc_net_kernel,
        out_shape=jax.ShapeDtypeStruct((np_, cp), jnp.float32),
        grid_spec=pltpu.PrefetchScalarGridSpec(
            num_scalar_prefetch=0,
            grid=(num_layers,),
            in_specs=[
                pl.BlockSpec(memory_space=pl.ANY),               # A_hat (HBM; DMA'd once)
                pl.BlockSpec((np_, fp), lambda l: (0, 0)),       # features
                pl.BlockSpec((fp, hp), lambda l: (0, 0)),        # W_in
                pl.BlockSpec((1, hp, hp), lambda l: (l, 0, 0)),  # W_layers (per-layer, double-buffered)
                pl.BlockSpec((hp, cp), lambda l: (0, 0)),        # W_out
            ],
            out_specs=pl.BlockSpec((np_, cp), lambda l: (0, 0)),  # resident; written at last step
            scratch_shapes=[
                pltpu.VMEM((np_, np_), jnp.bfloat16),   # A_hat (single VMEM copy)
                pltpu.VMEM((np_, hp), jnp.float32),     # h  (f32 accumulation)
                pltpu.VMEM((np_, hp), jnp.float32),     # h0 (initial features)
                pltpu.SemaphoreType.DMA,                # adjacency staging sem
            ],
        ),
        compiler_params=pltpu.CompilerParams(
            dimension_semantics=("arbitrary",),          # layer axis is sequential
            vmem_limit_bytes=int(vmem_limit),
        ),
    )(a_hat_p, x_p, w_in_p, w_lyr_p, w_out_p)

    return out[:n, :c_dim]


# ---------------------------- params / reference -----------------------------


def init_params(key, num_feats, num_classes, num_hidden, num_layers):
    """Deterministic glorot-ish init for all weight matrices (bias=False)."""
    keys = jax.random.split(key, max(num_layers, 1) + 2)

    def glorot(k, fan_in, fan_out):
        scale = jnp.sqrt(6.0 / (fan_in + fan_out))
        return jax.random.uniform(k, (fan_in, fan_out), jnp.float32, -scale, scale)

    if num_layers > 0:
        w_layers = jnp.stack(
            [glorot(keys[1 + i], num_hidden, num_hidden) for i in range(num_layers)]
        )
    else:
        w_layers = jnp.zeros((0, num_hidden, num_hidden), jnp.float32)

    return {
        "w_in": glorot(keys[0], num_feats, num_hidden),
        "w_layers": w_layers,
        "w_out": glorot(keys[-1], num_hidden, num_classes),
    }


def asgc_net_reference(params, adj, x, *, graph_norm=True):
    """Pure-JAX reference mirroring the kernel's bf16-operand / f32-accumulate
    matmul precision (so the check validates the Pallas plumbing tightly)."""
    a_hat = _normalize_adjacency(adj, graph_norm).astype(jnp.bfloat16)

    def mm(a, b):
        return jnp.dot(a.astype(jnp.bfloat16), b.astype(jnp.bfloat16),
                       preferred_element_type=jnp.float32)

    h = jax.nn.relu(mm(x, params["w_in"]))
    h0 = h
    for i in range(params["w_layers"].shape[0]):
        h = mm(a_hat, mm(h, params["w_layers"][i])) + h0
    return mm(h, params["w_out"])


# ---------------------------------- main -------------------------------------


if __name__ == "__main__":
    NUM_NODES = 64
    NUM_FEATS = 16
    NUM_HIDDEN = 32
    NUM_CLASSES = 8
    NUM_LAYERS = 2

    key = jax.random.PRNGKey(0)
    k_x, k_adj, k_params = jax.random.split(key, 3)

    # Node features (N, F)
    x = jax.random.normal(k_x, (NUM_NODES, NUM_FEATS), jnp.float32)

    # Random symmetric 0/1 adjacency, no self loops (added in normalization).
    upper = jax.random.bernoulli(k_adj, 0.15, (NUM_NODES, NUM_NODES))
    adj = jnp.triu(upper.astype(jnp.float32), k=1)
    adj = adj + adj.T

    params = init_params(k_params, NUM_FEATS, NUM_CLASSES, NUM_HIDDEN, NUM_LAYERS)

    out = asgc_net_forward(params, adj, x, graph_norm=True)
    out = jax.block_until_ready(out)

    assert out.shape == (NUM_NODES, NUM_CLASSES)
    assert out.dtype == jnp.float32
    assert bool(jnp.all(jnp.isfinite(out)))

    # bf16-MXU path on both sides; tolerance covers reassociation differences.
    ref = asgc_net_reference(params, adj, x, graph_norm=True)
    assert bool(jnp.allclose(out, ref, atol=3e-2, rtol=3e-2))

    print("KERNEL_OK")
</pallas_src>

<mosaic_0001>
module attributes {stable_mosaic.version = 11 : i64} {
  func.func @_asgc_net_kernel(%arg0: i32, %arg1: memref<128x128xbf16, #tpu.memory_space<any>>, %arg2: memref<128x128xbf16, #tpu.memory_space<vmem>>, %arg3: memref<128x128xbf16, #tpu.memory_space<vmem>>, %arg4: memref<1x128x128xbf16, #tpu.memory_space<vmem>>, %arg5: memref<128x128xbf16, #tpu.memory_space<vmem>>, %arg6: memref<128x128xf32, #tpu.memory_space<vmem>>, %arg7: memref<128x128xbf16, #tpu.memory_space<vmem>>, %arg8: memref<128x128xf32, #tpu.memory_space<vmem>>, %arg9: memref<128x128xf32, #tpu.memory_space<vmem>>, %arg10: memref<!tpu.dma_semaphore, #tpu.memory_space<semaphore_mem>>) attributes {dimension_semantics = [#tpu.dimension_semantics<arbitrary>], iteration_bounds = array<i64: 2>, scalar_prefetch = 0 : i64, scratch_operands = 4 : i64, tpu.core_type = #tpu.core_type<tc>, window_params = [{}, {pipeline_mode = #tpu.pipeline_mode<synchronous>, transform_indices = @transform_1, window_bounds = array<i64: 128, 128>}, {pipeline_mode = #tpu.pipeline_mode<synchronous>, transform_indices = @transform_2, window_bounds = array<i64: 128, 128>}, {transform_indices = @transform_3, window_bounds = array<i64: 1, 128, 128>}, {pipeline_mode = #tpu.pipeline_mode<synchronous>, transform_indices = @transform_4, window_bounds = array<i64: 128, 128>}, {pipeline_mode = #tpu.pipeline_mode<synchronous>, transform_indices = @transform_5, window_bounds = array<i64: 128, 128>}]} {
    %c0_i32 = arith.constant 0 : i32
    %0 = arith.cmpi eq, %arg0, %c0_i32 : i32
    %1 = arith.extui %0 : i1 to i32
    %c0_i32_0 = arith.constant 0 : i32
    %2 = arith.cmpi ne, %1, %c0_i32_0 : i32
    scf.if %2 {
      tpu.enqueue_dma source(%arg1 : memref<128x128xbf16, #tpu.memory_space<any>>) target(%arg7 : memref<128x128xbf16, #tpu.memory_space<vmem>>) target_semaphore(%arg10 : memref<!tpu.dma_semaphore, #tpu.memory_space<semaphore_mem>>)
      %c0_13 = arith.constant 0 : index
      %c0_14 = arith.constant 0 : index
      %17 = vector.load %arg2[%c0_13, %c0_14] : memref<128x128xbf16, #tpu.memory_space<vmem>>, vector<128x128xbf16>
      %c0_15 = arith.constant 0 : index
      %c0_16 = arith.constant 0 : index
      %18 = vector.load %arg3[%c0_15, %c0_16] : memref<128x128xbf16, #tpu.memory_space<vmem>>, vector<128x128xbf16>
      %cst_17 = arith.constant dense<0.000000e+00> : vector<128x128xf32>
      %19 = tpu.matmul %17, %18, %cst_17 {dimension_numbers = #tpu.dot_dimension_numbers<[1], [0], [0], [1], [0, 0, 1, 1], [], []>} : vector<128x128xbf16>, vector<128x128xbf16>, vector<128x128xf32> -> vector<128x128xf32>
      %cst_18 = arith.constant 0.000000e+00 : f32
      %20 = vector.broadcast %cst_18 : f32 to vector<128x128xf32>
      %21 = arith.maximumf %19, %20 : vector<128x128xf32>
      %c0_19 = arith.constant 0 : index
      %c0_20 = arith.constant 0 : index
      %22 = vector.load %arg8[%c0_19, %c0_20] : memref<128x128xf32, #tpu.memory_space<vmem>>, vector<128x128xf32>
      tpu.vector_store %arg8[%c0_19, %c0_20], %21 {strides = array<i32>} : memref<128x128xf32, #tpu.memory_space<vmem>>, vector<128x128xf32>,
      %c0_21 = arith.constant 0 : index
      %c0_22 = arith.constant 0 : index
      %23 = vector.load %arg9[%c0_21, %c0_22] : memref<128x128xf32, #tpu.memory_space<vmem>>, vector<128x128xf32>
      tpu.vector_store %arg9[%c0_21, %c0_22], %21 {strides = array<i32>} : memref<128x128xf32, #tpu.memory_space<vmem>>, vector<128x128xf32>,
      tpu.wait_dma2 semaphore(%arg10 : memref<!tpu.dma_semaphore, #tpu.memory_space<semaphore_mem>>) src(%arg1 : memref<128x128xbf16, #tpu.memory_space<any>>) dst(%arg7 : memref<128x128xbf16, #tpu.memory_space<vmem>>)
    } else {
    }
    %c0 = arith.constant 0 : index
    %c0_1 = arith.constant 0 : index
    %3 = vector.load %arg8[%c0, %c0_1] : memref<128x128xf32, #tpu.memory_space<vmem>>, vector<128x128xf32>
    %4 = arith.truncf %3 : vector<128x128xf32> to vector<128x128xbf16>
    %c0_2 = arith.constant 0 : index
    %c0_3 = arith.constant 0 : index
    %c0_4 = arith.constant 0 : index
    %5 = vector.load %arg4[%c0_2, %c0_3, %c0_4] : memref<1x128x128xbf16, #tpu.memory_space<vmem>>, vector<1x128x128xbf16>
    %6 = vector.shape_cast %5 : vector<1x128x128xbf16> to vector<128x128xbf16>
    %cst = arith.constant dense<0.000000e+00> : vector<128x128xf32>
    %7 = tpu.matmul %4, %6, %cst {dimension_numbers = #tpu.dot_dimension_numbers<[1], [0], [0], [1], [0, 0, 1, 1], [], []>} : vector<128x128xbf16>, vector<128x128xbf16>, vector<128x128xf32> -> vector<128x128xf32>
    %c0_5 = arith.constant 0 : index
    %c0_6 = arith.constant 0 : index
    %8 = vector.load %arg7[%c0_5, %c0_6] : memref<128x128xbf16, #tpu.memory_space<vmem>>, vector<128x128xbf16>
    %9 = arith.truncf %7 : vector<128x128xf32> to vector<128x128xbf16>
    %cst_7 = arith.constant dense<0.000000e+00> : vector<128x128xf32>
    %10 = tpu.matmul %8, %9, %cst_7 {dimension_numbers = #tpu.dot_dimension_numbers<[1], [0], [0], [1], [0, 0, 1, 1], [], []>} : vector<128x128xbf16>, vector<128x128xbf16>, vector<128x128xf32> -> vector<128x128xf32>
    %c0_8 = arith.constant 0 : index
    %c0_9 = arith.constant 0 : index
    %11 = vector.load %arg9[%c0_8, %c0_9] : memref<128x128xf32, #tpu.memory_space<vmem>>, vector<128x128xf32>
    %12 = arith.addf %10, %11 : vector<128x128xf32>
    %c0_10 = arith.constant 0 : index
    %c0_11 = arith.constant 0 : index
    %13 = vector.load %arg8[%c0_10, %c0_11] : memref<128x128xf32, #tpu.memory_space<vmem>>, vector<128x128xf32>
    tpu.vector_store %arg8[%c0_10, %c0_11], %12 {strides = array<i32>} : memref<128x128xf32, #tpu.memory_space<vmem>>, vector<128x128xf32>,
    %c1_i32 = arith.constant 1 : i32
    %14 = arith.cmpi eq, %arg0, %c1_i32 : i32
    %15 = arith.extui %14 : i1 to i32
    %c0_i32_12 = arith.constant 0 : i32
    %16 = arith.cmpi ne, %15, %c0_i32_12 : i32
    scf.if %16 {
      %c0_13 = arith.constant 0 : index
      %c0_14 = arith.constant 0 : index
      %17 = vector.load %arg8[%c0_13, %c0_14] : memref<128x128xf32, #tpu.memory_space<vmem>>, vector<128x128xf32>
      %18 = arith.truncf %17 : vector<128x128xf32> to vector<128x128xbf16>
      %c0_15 = arith.constant 0 : index
      %c0_16 = arith.constant 0 : index
      %19 = vector.load %arg5[%c0_15, %c0_16] : memref<128x128xbf16, #tpu.memory_space<vmem>>, vector<128x128xbf16>
      %cst_17 = arith.constant dense<0.000000e+00> : vector<128x128xf32>
      %20 = tpu.matmul %18, %19, %cst_17 {dimension_numbers = #tpu.dot_dimension_numbers<[1], [0], [0], [1], [0, 0, 1, 1], [], []>} : vector<128x128xbf16>, vector<128x128xbf16>, vector<128x128xf32> -> vector<128x128xf32>
      %c0_18 = arith.constant 0 : index
      %c0_19 = arith.constant 0 : index
      %21 = vector.load %arg6[%c0_18, %c0_19] : memref<128x128xf32, #tpu.memory_space<vmem>>, vector<128x128xf32>
      tpu.vector_store %arg6[%c0_18, %c0_19], %20 {strides = array<i32>} : memref<128x128xf32, #tpu.memory_space<vmem>>, vector<128x128xf32>,
    } else {
    }
    return
  }
  func.func @transform_1(%arg0: i32) -> (i32, i32) {
    %c0_i32 = arith.constant 0 : i32
    %c0_i32_0 = arith.constant 0 : i32
    %c0_i32_1 = arith.constant 0 : i32
    return %c0_i32, %c0_i32_0 : i32, i32
  }
  func.func @transform_2(%arg0: i32) -> (i32, i32) {
    %c0_i32 = arith.constant 0 : i32
    %c0_i32_0 = arith.constant 0 : i32
    %c0_i32_1 = arith.constant 0 : i32
    return %c0_i32, %c0_i32_0 : i32, i32
  }
  func.func @transform_3(%arg0: i32) -> (i32, i32, i32) {
    %c0_i32 = arith.constant 0 : i32
    %c0_i32_0 = arith.constant 0 : i32
    %c0_i32_1 = arith.constant 0 : i32
    return %arg0, %c0_i32, %c0_i32_0 : i32, i32, i32
  }
  func.func @transform_4(%arg0: i32) -> (i32, i32) {
    %c0_i32 = arith.constant 0 : i32
    %c0_i32_0 = arith.constant 0 : i32
    %c0_i32_1 = arith.constant 0 : i32
    return %c0_i32, %c0_i32_0 : i32, i32
  }
  func.func @transform_5(%arg0: i32) -> (i32, i32) {
    %c0_i32 = arith.constant 0 : i32
    %c0_i32_0 = arith.constant 0 : i32
    %c0_i32_1 = arith.constant 0 : i32
    return %c0_i32, %c0_i32_0 : i32, i32
  }
}

</mosaic_0001>

<llo_original>
// kernel: tpu_custom_call.1
$region0: #{tpu_custom_call.1}
  #allocation0 [shape = 'u32[]', space=smem, size = 0x4, offset = 0x4, fixed_abs, tag = 'smem constant byte address 0x4 - core index']
  #allocation1 [shape = 'u32[72,128]{1,0:T(1,128)}', space=vmem, size = 0x9000, scoped, tag = 'internal scratch']
  #allocation2 [shape = 'bf16[128,128]{1,0:T(8,128)(2,1)}', space=vmem, size = 0x8000, scoped, tag = 'scratch operand']
  #allocation3 [shape = 'f32[128,128]{1,0:T(8,128)}', space=vmem, size = 0x10000, scoped, tag = 'scratch operand']
  #allocation4 [shape = 'f32[128,128]{1,0:T(8,128)}', space=vmem, size = 0x10000, scoped, tag = 'scratch operand']
  #allocation5 [shape = 's32[1]{0}', space=sflag, size = 0x4, scoped, tag = 'scratch operand']
  #allocation14 [shape = 's32[]', space=sflag, size = 0x4, offset = 0, fixed_abs, tag = 'sflag constant byte address 0x0 - dummy sync flag']
  #allocation15 [shape = 's32[]', space=sflag, size = 0x4, offset = 0, fixed_abs, tag = 'sflag constant byte address 0x0 - dummy sync flag']
  #allocation16 [shape = 'u32[]', space=smem, size = 0x4, offset = 0x44, fixed_abs, tag = 'smem constant byte address 0x44 - assertion arg 0']
  #allocation17 [shape = 'u32[]', space=smem, size = 0x4, offset = 0x48, fixed_abs, tag = 'smem constant byte address 0x48 - assertion arg 1']
  %s0 = inlined_call_operand.hbm [shape: bf16[128,128], index: 0, kind: input, shape index: {}]
  %s1 = inlined_call_operand.hbm [shape: bf16[128,128], index: 1, kind: input, shape index: {}]
  %s2 = inlined_call_operand.hbm [shape: bf16[128,128], index: 2, kind: input, shape index: {}]
  %s3 = inlined_call_operand.hbm [shape: bf16[2,128,128], index: 3, kind: input, shape index: {}]
  %s4 = inlined_call_operand.hbm [shape: bf16[128,128], index: 4, kind: input, shape index: {}]
  %s5 = inlined_call_operand.hbm [shape: f32[128,128], index: 5, kind: output, shape index: {}]
  %s6 = sld [smem:[#allocation0]]
  $region77: #{tpu_custom_call.1} parent=0
    _
  %s8 = ssub.s32 1, %s6
  %s9 = scalar_select 0, %s8, %s6
  $region1: #{tpu_custom_call.1} parent=0
    #allocation6 [shape = 'u8[32768]{0}', space=vmem, size = 0x8000, scoped, tag = 'input window, operand 1, single buffered']
    #allocation7 [shape = 's32[2]{0}', space=sflag, size = 0x8, scoped, tag = 'scoped memory for tpu_custom_call.1']
    #allocation8 [shape = 's32[2]{0}', space=sflag, size = 0x8, scoped, tag = 'scoped memory for tpu_custom_call.1']
    #allocation9 [shape = 'u8[32768]{0}', space=vmem, size = 0x8000, scoped, tag = 'input window, operand 2, single buffered']
    #allocation10 [shape = 's32[1]{0}', space=sflag, size = 0x4, scoped, tag = 'scoped memory for tpu_custom_call.1']
    #allocation11 [shape = 'u8[65536]{0}', space=vmem, size = 0x10000, scoped, tag = 'input window, operand 3']
    #allocation12 [shape = 'u8[32768]{0}', space=vmem, size = 0x8000, scoped, tag = 'input window, operand 4, single buffered']
    #allocation13 [shape = 'u8[65536]{0}', space=vmem, size = 0x10000, scoped, tag = 'output window, operand 0, single buffered']
    %10 = vsyncpa [#allocation7], 0
    %11 = vsyncpa [#allocation10], 0
    %12 = vsyncpa [#allocation8], 0
    loop: start=0, step=1, limit=4
    $region2: #{tpu_custom_call.1} parent=1 // loop_pre_header
      _
    $region3: #{tpu_custom_call.1} parent=1 // loop_header
      %s14 = sphi 0, %s18
      %p15 = scmp.ge.s32.totalorder %s14, 4
      %s22 = sphi 0, %s22
      %s24 = sphi 0, %s22
      %s25 = sphi 0, %s24
      %s39 = sphi 0, %s25
      %s43 = sphi 0, %s43
      %s45 = sphi 0, %s43
      %s46 = sphi 0, %s45
      %s60 = sphi 0, %s46
      %s66 = sphi 0, %s68
      %s69 = sphi 0, %s66
      %s70 = sphi 0, %s69
      %s86 = sphi 0, %s70
      %s90 = sphi 0, %s90
      %s92 = sphi 0, %s90
      %s93 = sphi 0, %s92
      %s107 = sphi 0, %s93
      %s111 = sphi 0, %s111
      %s113 = sphi 0, %s111
      %s114 = sphi 0, %s113
      %s128 = sphi 0, %s114
    $region4: #{tpu_custom_call.1} parent=1 // loop_header_branch
      %17 = sbr.rel (%p15) target = $region8
    $region5: #{tpu_custom_call.1} parent=1 // loop_body
      %s19 = ssub.s32 %s14, 1
      %s20 = ssub.s32 %s14, 2
      %s21 = sadd.s32 %s14, 1
      %s23 = sadd.s32 %s22, 1
      %p26 = scmp.eq.s32.totalorder %s14, 1
      %p27 = scmp.ne.s32.totalorder %s22, %s24
      %p28 = scmp.eq.s32.totalorder %s14, 0
      %p29 = por %p27, %p28
      %p30 = scmp.ne.s32.totalorder %s22, %s24
      %p31 = scmp.eq.s32.totalorder %s19, 1
      %p32 = por %p30, %p31
      %p33 = scmp.ne.s32.totalorder %s24, %s25
      %p34 = scmp.eq.s32.totalorder %s19, 0
      %p35 = por %p33, %p34
      %p36 = scmp.ne.s32.totalorder %s24, %s25
      %p37 = scmp.eq.s32.totalorder %s20, 1
      %p38 = por %p36, %p37
      %p40 = scmp.ne.s32.totalorder %s25, %s39
      %p41 = scmp.eq.s32.totalorder %s20, 0
      %p42 = por %p40, %p41
      %s44 = sadd.s32 %s43, 1
      %p47 = scmp.eq.s32.totalorder %s14, 1
      %p48 = scmp.ne.s32.totalorder %s43, %s45
      %p49 = scmp.eq.s32.totalorder %s14, 0
      %p50 = por %p48, %p49
      %p51 = scmp.ne.s32.totalorder %s43, %s45
      %p52 = scmp.eq.s32.totalorder %s19, 1
      %p53 = por %p51, %p52
      %p54 = scmp.ne.s32.totalorder %s45, %s46
      %p55 = scmp.eq.s32.totalorder %s19, 0
      %p56 = por %p54, %p55
      %p57 = scmp.ne.s32.totalorder %s45, %s46
      %p58 = scmp.eq.s32.totalorder %s20, 1
      %p59 = por %p57, %p58
      %p61 = scmp.ne.s32.totalorder %s46, %s60
      %p62 = scmp.eq.s32.totalorder %s20, 0
      %p63 = por %p61, %p62
      %s64 = ssub.s32 %s14, %s21
      %p65 = scmp.eq.s32.totalorder %s64, 0
      %s67 = sadd.s32 %s66, 1
      %s68 = scalar_select %p65, %s66, %s67
      %p71 = pneg %p65
      %p72 = scmp.eq.s32.totalorder %s14, 1
      %p73 = por %p71, %p72
      %p74 = scmp.ne.s32.totalorder %s66, %s69
      %p75 = scmp.eq.s32.totalorder %s14, 0
      %p76 = por %p74, %p75
      %p77 = scmp.ne.s32.totalorder %s66, %s69
      %p78 = scmp.eq.s32.totalorder %s19, 1
      %p79 = por %p77, %p78
      %p80 = scmp.ne.s32.totalorder %s69, %s70
      %p81 = scmp.eq.s32.totalorder %s19, 0
      %p82 = por %p80, %p81
      %p83 = scmp.ne.s32.totalorder %s69, %s70
      %p84 = scmp.eq.s32.totalorder %s20, 1
      %p85 = por %p83, %p84
      %p87 = scmp.ne.s32.totalorder %s70, %s86
      %p88 = scmp.eq.s32.totalorder %s20, 0
      %p89 = por %p87, %p88
      %s91 = sadd.s32 %s90, 1
      %p94 = scmp.eq.s32.totalorder %s14, 1
      %p95 = scmp.ne.s32.totalorder %s90, %s92
      %p96 = scmp.eq.s32.totalorder %s14, 0
      %p97 = por %p95, %p96
      %p98 = scmp.ne.s32.totalorder %s90, %s92
      %p99 = scmp.eq.s32.totalorder %s19, 1
      %p100 = por %p98, %p99
      %p101 = scmp.ne.s32.totalorder %s92, %s93
      %p102 = scmp.eq.s32.totalorder %s19, 0
      %p103 = por %p101, %p102
      %p104 = scmp.ne.s32.totalorder %s92, %s93
      %p105 = scmp.eq.s32.totalorder %s20, 1
      %p106 = por %p104, %p105
      %p108 = scmp.ne.s32.totalorder %s93, %s107
      %p109 = scmp.eq.s32.totalorder %s20, 0
      %p110 = por %p108, %p109
      %s112 = sadd.s32 %s111, 1
      %p115 = scmp.eq.s32.totalorder %s14, 1
      %p116 = scmp.ne.s32.totalorder %s111, %s113
      %p117 = scmp.eq.s32.totalorder %s14, 0
      %p118 = por %p116, %p117
      %p119 = scmp.ne.s32.totalorder %s111, %s113
      %p120 = scmp.eq.s32.totalorder %s19, 1
      %p121 = por %p119, %p120
      %p122 = scmp.ne.s32.totalorder %s113, %s114
      %p123 = scmp.eq.s32.totalorder %s19, 0
      %p124 = por %p122, %p123
      %p125 = scmp.ne.s32.totalorder %s113, %s114
      %p126 = scmp.eq.s32.totalorder %s20, 1
      %p127 = por %p125, %p126
      %p129 = scmp.ne.s32.totalorder %s114, %s128
      %p130 = scmp.eq.s32.totalorder %s20, 0
      %p131 = por %p129, %p130
      %p132 = scmp.le.s32.totalorder 1, %s14
      %p133 = scmp.lt.s32.totalorder %s14, 3
      %p134 = pnand %p132, %p133
      %p135 = pneg %p134
      // Predicated region
      $region9: #{tpu_custom_call.1} parent=5 // pred_check
        _
      $region10: #{tpu_custom_call.1} parent=5 // pred_check_branch
        %137 = sbr.rel (%p134) target = $region12
      $region11: #{tpu_custom_call.1} parent=5 // pred_region
        %s138 = ssub.s32 %s14, 1
        // Predicated region
        $region13: #{tpu_custom_call.1} parent=11 // pred_check
          %p139 = pneg %p35
        $region14: #{tpu_custom_call.1} parent=11 // pred_check_branch
          %141 = sbr.rel (%p139) target = $region16
        $region15: #{tpu_custom_call.1} parent=11 // pred_region
          %143 = vsyncadd [#allocation7], 0
          %s144 = sshll.u32 %s1, 4
          %s145 = int_to_ptr.hbm [resolvable:$true] %s144
          %s146 = sshll.u32 [#allocation6], 4
          %s147 = int_to_ptr.vmem [resolvable:$true] %s146
          %152 = dma.hbm_to_vmem [thread:$0]  %s145, 1024, %s147, [#allocation7], 64, 64, 4
        $region16: #{tpu_custom_call.1} parent=11 // pred_fallthru
          _
        // Predicated region
        $region17: #{tpu_custom_call.1} parent=11 // pred_check
          %p153 = pneg %p56
        $region18: #{tpu_custom_call.1} parent=11 // pred_check_branch
          %155 = sbr.rel (%p153) target = $region20
        $region19: #{tpu_custom_call.1} parent=11 // pred_region
          %157 = vsyncadd [#allocation10], 0
          %s158 = sshll.u32 %s2, 4
          %s159 = int_to_ptr.hbm [resolvable:$true] %s158
          %s160 = sshll.u32 [#allocation9], 4
          %s161 = int_to_ptr.vmem [resolvable:$true] %s160
          %166 = dma.hbm_to_vmem [thread:$0]  %s159, 1024, %s161, [#allocation10], 64, 64, 4
        $region20: #{tpu_custom_call.1} parent=11 // pred_fallthru
          _
        // Predicated region
        $region21: #{tpu_custom_call.1} parent=11 // pred_check
          %p167 = pneg %p103
        $region22: #{tpu_custom_call.1} parent=11 // pred_check_branch
          %169 = sbr.rel (%p167) target = $region24
        $region23: #{tpu_custom_call.1} parent=11 // pred_region
          %171 = vsyncadd [#allocation10], 0
          %s172 = sshll.u32 %s4, 4
          %s173 = int_to_ptr.hbm [resolvable:$true] %s172
          %s174 = sshll.u32 [#allocation12], 4
          %s175 = int_to_ptr.vmem [resolvable:$true] %s174
          %180 = dma.hbm_to_vmem [thread:$0]  %s173, 1024, %s175, [#allocation10], 64, 64, 4
        $region24: #{tpu_custom_call.1} parent=11 // pred_fallthru
          _
      $region12: #{tpu_custom_call.1} parent=5 // pred_fallthru
        _
      %p181 = scmp.lt.s32.totalorder %s14, 2
      // Predicated region
      $region25: #{tpu_custom_call.1} parent=5 // pred_check
        %p182 = pneg %p181
      $region26: #{tpu_custom_call.1} parent=5 // pred_check_branch
        %184 = sbr.rel (%p182) target = $region28
      $region27: #{tpu_custom_call.1} parent=5 // pred_region
        // Predicated region
        $region29: #{tpu_custom_call.1} parent=27 // pred_check
          %p185 = pneg %p76
        $region30: #{tpu_custom_call.1} parent=27 // pred_check_branch
          %187 = sbr.rel (%p185) target = $region32
        $region31: #{tpu_custom_call.1} parent=27 // pred_region
          %s188 = sand.u32 %s14, 1
          %s189 = scalar_lea.sflag [#allocation7], %s188
          %s190 = sand.u32 %s66, 1
          %s191 = smul.addr %s190, 64
          %s192 = scalar_lea.vmem [#allocation11], %s191
          %194 = vsyncadd %s189, 0
          %s195 = smul.addr %s14, 16
          %s196 = smul.addr %s195, 4
          %s197 = scalar_lea.hbm %s3, %s196
          %s198 = sshll.u32 %s197, 4
          %s199 = int_to_ptr.hbm [resolvable:$true] %s198
          %s200 = sshll.u32 %s192, 4
          %s201 = int_to_ptr.vmem [resolvable:$true] %s200
          %206 = dma.hbm_to_vmem [thread:$0]  %s199, 1024, %s201, %s189, 64, 64, 4
        $region32: #{tpu_custom_call.1} parent=27 // pred_fallthru
          _
      $region28: #{tpu_custom_call.1} parent=5 // pred_fallthru
        _
      %p207 = scmp.le.s32.totalorder 1, %s14
      %p208 = scmp.lt.s32.totalorder %s14, 3
      %p209 = pnand %p207, %p208
      %p210 = pneg %p209
      // Predicated region
      $region33: #{tpu_custom_call.1} parent=5 // pred_check
        _
      $region34: #{tpu_custom_call.1} parent=5 // pred_check_branch
        %212 = sbr.rel (%p209) target = $region36
      $region35: #{tpu_custom_call.1} parent=5 // pred_region
        %s213 = ssub.s32 %s14, 1
        // Predicated region
        $region37: #{tpu_custom_call.1} parent=35 // pred_check
          %p214 = pneg %p35
        $region38: #{tpu_custom_call.1} parent=35 // pred_check_branch
          %216 = sbr.rel (%p214) target = $region40
        $region39: #{tpu_custom_call.1} parent=35 // pred_region
          %218 = dma.done [#allocation7], 1024
        $region40: #{tpu_custom_call.1} parent=35 // pred_fallthru
          _
        // Predicated region
        $region41: #{tpu_custom_call.1} parent=35 // pred_check
          %p219 = pneg %p56
        $region42: #{tpu_custom_call.1} parent=35 // pred_check_branch
          %221 = sbr.rel (%p219) target = $region44
        $region43: #{tpu_custom_call.1} parent=35 // pred_region
          %223 = dma.done [#allocation10], 1024
        $region44: #{tpu_custom_call.1} parent=35 // pred_fallthru
          _
        %s224 = sand.u32 %s19, 1
        %s225 = scalar_lea.sflag [#allocation7], %s224
        %s226 = sand.u32 %s69, 1
        %s227 = smul.addr %s226, 64
        %s228 = scalar_lea.vmem [#allocation11], %s227
        // Predicated region
        $region45: #{tpu_custom_call.1} parent=35 // pred_check
          %p229 = pneg %p82
        $region46: #{tpu_custom_call.1} parent=35 // pred_check_branch
          %231 = sbr.rel (%p229) target = $region48
        $region47: #{tpu_custom_call.1} parent=35 // pred_region
          %233 = dma.done %s225, 1024
        $region48: #{tpu_custom_call.1} parent=35 // pred_fallthru
          _
        // Predicated region
        $region49: #{tpu_custom_call.1} parent=35 // pred_check
          %p234 = pneg %p103
        $region50: #{tpu_custom_call.1} parent=35 // pred_check_branch
          %236 = sbr.rel (%p234) target = $region52
        $region51: #{tpu_custom_call.1} parent=35 // pred_region
          %238 = dma.done [#allocation10], 1024
        $region52: #{tpu_custom_call.1} parent=35 // pred_fallthru
          _
        %p239 = pneg %p35
        %p240 = pneg %p32
        %p241 = pneg %p56
        %p242 = pneg %p53
        %s243 = sand.u32 %s19, 1
        %s244 = scalar_lea.sflag [#allocation7], %s243
        %s245 = sand.u32 %s69, 1
        %s246 = smul.addr %s245, 64
        %s247 = scalar_lea.vmem [#allocation11], %s246
        %p248 = pneg %p82
        %p249 = pneg %p79
        %p250 = pneg %p103
        %p251 = pneg %p100
        %p252 = pneg %p124
        %p253 = pneg %p121
        %p254 = scmp.eq.s32.totalorder %s19, 0
        // Predicated region
        $region53: #{tpu_custom_call.1} parent=35 // pred_check
          %p255 = pneg %p254
        $region54: #{tpu_custom_call.1} parent=35 // pred_check_branch
          %257 = sbr.rel (%p255) target = $region56
        $region55: #{tpu_custom_call.1} parent=35 // pred_region
          // Predicated region
          $region57: #{tpu_custom_call.1} parent=55 // pred_check
            _
          $region58: #{tpu_custom_call.1} parent=55 // pred_check_branch
            %259 = sbr.rel target = $region60
          $region59: #{tpu_custom_call.1} parent=55 // pred_region
            %260 = sst [smem:[#allocation16]] [#allocation15]
            %261 = sst [smem:[#allocation17]] [#allocation14]
          $region60: #{tpu_custom_call.1} parent=55 // pred_fallthru
            _
          %263 = shalt.err (0)
          %s265 = sshll.u32 %s0, 4
          %s266 = int_to_ptr.hbm [resolvable:$true] %s265
          %s267 = sshll.u32 [#allocation2], 4
          %s268 = int_to_ptr.vmem [resolvable:$true] %s267
          %270 = dma.hbm_to_vmem [thread:$0]  %s266, 1024, %s268, [#allocation5]
          %v271 = vld [vmem:[#allocation6] sm:$0xf]
          %v272 = vld [vmem:[#allocation6 + $0x4] sm:$0xf]
          %v273 = vld [vmem:[#allocation6 + $0x8] sm:$0xf]
          %v274 = vld [vmem:[#allocation6 + $0xc] sm:$0xf]
          %v275 = vld [vmem:[#allocation6 + $0x10] sm:$0xf]
          %v276 = vld [vmem:[#allocation6 + $0x14] sm:$0xf]
          %v277 = vld [vmem:[#allocation6 + $0x18] sm:$0xf]
          %v278 = vld [vmem:[#allocation6 + $0x1c] sm:$0xf]
          %v279 = vld [vmem:[#allocation6 + $0x20] sm:$0xf]
          %v280 = vld [vmem:[#allocation6 + $0x24] sm:$0xf]
          %v281 = vld [vmem:[#allocation6 + $0x28] sm:$0xf]
          %v282 = vld [vmem:[#allocation6 + $0x2c] sm:$0xf]
          %v283 = vld [vmem:[#allocation6 + $0x30] sm:$0xf]
          %v284 = vld [vmem:[#allocation6 + $0x34] sm:$0xf]
          %v285 = vld [vmem:[#allocation6 + $0x38] sm:$0xf]
          %v286 = vld [vmem:[#allocation6 + $0x3c] sm:$0xf]
          %v287 = vld [vmem:[#allocation9] sm:$0xf]
          %v288 = vld [vmem:[#allocation9 + $0x4] sm:$0xf]
          %v289 = vld [vmem:[#allocation9 + $0x8] sm:$0xf]
          %v290 = vld [vmem:[#allocation9 + $0xc] sm:$0xf]
          %v291 = vld [vmem:[#allocation9 + $0x10] sm:$0xf]
          %v292 = vld [vmem:[#allocation9 + $0x14] sm:$0xf]
          %v293 = vld [vmem:[#allocation9 + $0x18] sm:$0xf]
          %v294 = vld [vmem:[#allocation9 + $0x1c] sm:$0xf]
          %v295 = vld [vmem:[#allocation9 + $0x20] sm:$0xf]
          %v296 = vld [vmem:[#allocation9 + $0x24] sm:$0xf]
          %v297 = vld [vmem:[#allocation9 + $0x28] sm:$0xf]
          %v298 = vld [vmem:[#allocation9 + $0x2c] sm:$0xf]
          %v299 = vld [vmem:[#allocation9 + $0x30] sm:$0xf]
          %v300 = vld [vmem:[#allocation9 + $0x34] sm:$0xf]
          %v301 = vld [vmem:[#allocation9 + $0x38] sm:$0xf]
          %v302 = vld [vmem:[#allocation9 + $0x3c] sm:$0xf]
          %v319 = vunpack.c.l.b16 %v271
          %v320 = vunpack.c.l.b16 %v272
          %v321 = vunpack.c.l.b16 %v273
          %v322 = vunpack.c.l.b16 %v274
          %v323 = vunpack.c.l.b16 %v275
          %v324 = vunpack.c.l.b16 %v276
          %v325 = vunpack.c.l.b16 %v277
          %v326 = vunpack.c.l.b16 %v278
          %v327 = vunpack.c.l.b16 %v279
          %v328 = vunpack.c.l.b16 %v280
          %v329 = vunpack.c.l.b16 %v281
          %v330 = vunpack.c.l.b16 %v282
          %v331 = vunpack.c.l.b16 %v283
          %v332 = vunpack.c.l.b16 %v284
          %v333 = vunpack.c.l.b16 %v285
          %v334 = vunpack.c.l.b16 %v286
          %v335 = vpack.c.b16 %v320, %v319
          %v336 = vpack.c.b16 %v322, %v321
          %v337 = vpack.c.b16 %v324, %v323
          %v338 = vpack.c.b16 %v326, %v325
          %v339 = vpack.c.b16 %v328, %v327
          %v340 = vpack.c.b16 %v330, %v329
          %v341 = vpack.c.b16 %v332, %v331
          %v342 = vpack.c.b16 %v334, %v333
          %v367 = vunpack.c.l.b16 %v287
          %v368 = vunpack.c.l.b16 %v288
          %v369 = vunpack.c.l.b16 %v289
          %v370 = vunpack.c.l.b16 %v290
          %v371 = vunpack.c.l.b16 %v291
          %v372 = vunpack.c.l.b16 %v292
          %v373 = vunpack.c.l.b16 %v293
          %v374 = vunpack.c.l.b16 %v294
          %v375 = vunpack.c.l.b16 %v295
          %v376 = vunpack.c.l.b16 %v296
          %v377 = vunpack.c.l.b16 %v297
          %v378 = vunpack.c.l.b16 %v298
          %v379 = vunpack.c.l.b16 %v299
          %v380 = vunpack.c.l.b16 %v300
          %v381 = vunpack.c.l.b16 %v301
          %v382 = vunpack.c.l.b16 %v302
          %v383 = vpack.c.b16 %v368, %v367
          %v384 = vpack.c.b16 %v370, %v369
          %v385 = vpack.c.b16 %v372, %v371
          %v386 = vpack.c.b16 %v374, %v373
          %v387 = vpack.c.b16 %v376, %v375
          %v388 = vpack.c.b16 %v378, %v377
          %v389 = vpack.c.b16 %v380, %v379
          %v390 = vpack.c.b16 %v382, %v381
          %399 = vmatpush.bf16.msra.mxu0 %v390
          %400 = vmatpush.bf16.msra.mxu0 %v389
          %401 = vmatpush.bf16.msra.mxu0 %v388
          %402 = vmatpush.bf16.msra.mxu0 %v387
          %403 = vmatpush.bf16.msra.mxu0 %v386
          %404 = vmatpush.bf16.msra.mxu0 %v385
          %405 = vmatpush.bf16.msra.mxu0 %v384
          %406 = vmatpush.bf16.msra.mxu0 %v383
          %407 = vmatmul.bf16.gmra.mxu0 %v335
          %v408 = vpop.f32.mrf.mxu0
          %v409 = vadd.f32 0.0, %v408
          %v410 = vpop.f32.mrf.mxu0
          %v411 = vadd.f32 0.0, %v410
          %412 = vmatmul.bf16.gmra.mxu0 %v336
          %v413 = vpop.f32.mrf.mxu0
          %v414 = vadd.f32 0.0, %v413
          %v415 = vpop.f32.mrf.mxu0
          %v416 = vadd.f32 0.0, %v415
          %417 = vmatmul.bf16.gmra.mxu0 %v337
          %v418 = vpop.f32.mrf.mxu0
          %v419 = vadd.f32 0.0, %v418
          %v420 = vpop.f32.mrf.mxu0
          %v421 = vadd.f32 0.0, %v420
          %422 = vmatmul.bf16.gmra.mxu0 %v338
          %v423 = vpop.f32.mrf.mxu0
          %v424 = vadd.f32 0.0, %v423
          %v425 = vpop.f32.mrf.mxu0
          %v426 = vadd.f32 0.0, %v425
          %427 = vmatmul.bf16.gmra.mxu0 %v339
          %v428 = vpop.f32.mrf.mxu0
          %v429 = vadd.f32 0.0, %v428
          %v430 = vpop.f32.mrf.mxu0
          %v431 = vadd.f32 0.0, %v430
          %432 = vmatmul.bf16.gmra.mxu0 %v340
          %v433 = vpop.f32.mrf.mxu0
          %v434 = vadd.f32 0.0, %v433
          %v435 = vpop.f32.mrf.mxu0
          %v436 = vadd.f32 0.0, %v435
          %437 = vmatmul.bf16.gmra.mxu0 %v341
          %v438 = vpop.f32.mrf.mxu0
          %v439 = vadd.f32 0.0, %v438
          %v440 = vpop.f32.mrf.mxu0
          %v441 = vadd.f32 0.0, %v440
          %442 = vmatmul.bf16.gmra.mxu0 %v342
          %v443 = vpop.f32.mrf.mxu0
          %v444 = vadd.f32 0.0, %v443
          %v445 = vpop.f32.mrf.mxu0
          %v446 = vadd.f32 0.0, %v445
          %447 = vdwg.mxu0
          %v448 = vmax.f32 %v409, 0.0
          %v449 = vmax.f32 %v411, 0.0
          %v450 = vmax.f32 %v414, 0.0
          %v451 = vmax.f32 %v416, 0.0
          %v452 = vmax.f32 %v419, 0.0
          %v453 = vmax.f32 %v421, 0.0
          %v454 = vmax.f32 %v424, 0.0
          %v455 = vmax.f32 %v426, 0.0
          %v456 = vmax.f32 %v429, 0.0
          %v457 = vmax.f32 %v431, 0.0
          %v458 = vmax.f32 %v434, 0.0
          %v459 = vmax.f32 %v436, 0.0
          %v460 = vmax.f32 %v439, 0.0
          %v461 = vmax.f32 %v441, 0.0
          %v462 = vmax.f32 %v444, 0.0
          %v463 = vmax.f32 %v446, 0.0
          %464 = vst [vmem:[#allocation3] sm:$0xff] %v448
          %465 = vst [vmem:[#allocation3 + $0x8] sm:$0xff] %v449
          %466 = vst [vmem:[#allocation3 + $0x10] sm:$0xff] %v450
          %467 = vst [vmem:[#allocation3 + $0x18] sm:$0xff] %v451
          %468 = vst [vmem:[#allocation3 + $0x20] sm:$0xff] %v452
          %469 = vst [vmem:[#allocation3 + $0x28] sm:$0xff] %v453
          %470 = vst [vmem:[#allocation3 + $0x30] sm:$0xff] %v454
          %471 = vst [vmem:[#allocation3 + $0x38] sm:$0xff] %v455
          %472 = vst [vmem:[#allocation3 + $0x40] sm:$0xff] %v456
          %473 = vst [vmem:[#allocation3 + $0x48] sm:$0xff] %v457
          %474 = vst [vmem:[#allocation3 + $0x50] sm:$0xff] %v458
          %475 = vst [vmem:[#allocation3 + $0x58] sm:$0xff] %v459
          %476 = vst [vmem:[#allocation3 + $0x60] sm:$0xff] %v460
          %477 = vst [vmem:[#allocation3 + $0x68] sm:$0xff] %v461
          %478 = vst [vmem:[#allocation3 + $0x70] sm:$0xff] %v462
          %479 = vst [vmem:[#allocation3 + $0x78] sm:$0xff] %v463
          %480 = vst [vmem:[#allocation4] sm:$0xff] %v448
          %481 = vst [vmem:[#allocation4 + $0x8] sm:$0xff] %v449
          %482 = vst [vmem:[#allocation4 + $0x10] sm:$0xff] %v450
          %483 = vst [vmem:[#allocation4 + $0x18] sm:$0xff] %v451
          %484 = vst [vmem:[#allocation4 + $0x20] sm:$0xff] %v452
          %485 = vst [vmem:[#allocation4 + $0x28] sm:$0xff] %v453
          %486 = vst [vmem:[#allocation4 + $0x30] sm:$0xff] %v454
          %487 = vst [vmem:[#allocation4 + $0x38] sm:$0xff] %v455
          %488 = vst [vmem:[#allocation4 + $0x40] sm:$0xff] %v456
          %489 = vst [vmem:[#allocation4 + $0x48] sm:$0xff] %v457
          %490 = vst [vmem:[#allocation4 + $0x50] sm:$0xff] %v458
          %491 = vst [vmem:[#allocation4 + $0x58] sm:$0xff] %v459
          %492 = vst [vmem:[#allocation4 + $0x60] sm:$0xff] %v460
          %493 = vst [vmem:[#allocation4 + $0x68] sm:$0xff] %v461
          %494 = vst [vmem:[#allocation4 + $0x70] sm:$0xff] %v462
          %495 = vst [vmem:[#allocation4 + $0x78] sm:$0xff] %v463
          %s496 = smul.u32 4, 16
          %s497 = smul.u32 %s496, 1
          %s498 = sshll.u32 %s497, 4
          %499 = dma.done [#allocation5], %s498
        $region56: #{tpu_custom_call.1} parent=35 // pred_fallthru
          _
        %v500 = vld [vmem:[#allocation3] sm:$0xff]
        %v501 = vld [vmem:[#allocation3 + $0x8] sm:$0xff]
        %v502 = vld [vmem:[#allocation3 + $0x10] sm:$0xff]
        %v503 = vld [vmem:[#allocation3 + $0x18] sm:$0xff]
        %v504 = vld [vmem:[#allocation3 + $0x20] sm:$0xff]
        %v505 = vld [vmem:[#allocation3 + $0x28] sm:$0xff]
        %v506 = vld [vmem:[#allocation3 + $0x30] sm:$0xff]
        %v507 = vld [vmem:[#allocation3 + $0x38] sm:$0xff]
        %v508 = vld [vmem:[#allocation3 + $0x40] sm:$0xff]
        %v509 = vld [vmem:[#allocation3 + $0x48] sm:$0xff]
        %v510 = vld [vmem:[#allocation3 + $0x50] sm:$0xff]
        %v511 = vld [vmem:[#allocation3 + $0x58] sm:$0xff]
        %v512 = vld [vmem:[#allocation3 + $0x60] sm:$0xff]
        %v513 = vld [vmem:[#allocation3 + $0x68] sm:$0xff]
        %v514 = vld [vmem:[#allocation3 + $0x70] sm:$0xff]
        %v515 = vld [vmem:[#allocation3 + $0x78] sm:$0xff]
        %v516 = vpack.c.bf16 %v501, %v500
        %v517 = vpack.c.bf16 %v503, %v502
        %v518 = vpack.c.bf16 %v505, %v504
        %v519 = vpack.c.bf16 %v507, %v506
        %v520 = vpack.c.bf16 %v509, %v508
        %v521 = vpack.c.bf16 %v511, %v510
        %v522 = vpack.c.bf16 %v513, %v512
        %v523 = vpack.c.bf16 %v515, %v514
        %v524 = vld [vmem:[%s228] sm:$0xf]
        %v525 = vld [vmem:[%s228 + $0x4] sm:$0xf]
        %v526 = vld [vmem:[%s228 + $0x8] sm:$0xf]
        %v527 = vld [vmem:[%s228 + $0xc] sm:$0xf]
        %v528 = vld [vmem:[%s228 + $0x10] sm:$0xf]
        %v529 = vld [vmem:[%s228 + $0x14] sm:$0xf]
        %v530 = vld [vmem:[%s228 + $0x18] sm:$0xf]
        %v531 = vld [vmem:[%s228 + $0x1c] sm:$0xf]
        %v532 = vld [vmem:[%s228 + $0x20] sm:$0xf]
        %v533 = vld [vmem:[%s228 + $0x24] sm:$0xf]
        %v534 = vld [vmem:[%s228 + $0x28] sm:$0xf]
        %v535 = vld [vmem:[%s228 + $0x2c] sm:$0xf]
        %v536 = vld [vmem:[%s228 + $0x30] sm:$0xf]
        %v537 = vld [vmem:[%s228 + $0x34] sm:$0xf]
        %v538 = vld [vmem:[%s228 + $0x38] sm:$0xf]
        %v539 = vld [vmem:[%s228 + $0x3c] sm:$0xf]
        %v556 = vunpack.c.l.b16 %v524
        %v557 = vunpack.c.l.b16 %v525
        %v558 = vunpack.c.l.b16 %v526
        %v559 = vunpack.c.l.b16 %v527
        %v560 = vunpack.c.l.b16 %v528
        %v561 = vunpack.c.l.b16 %v529
        %v562 = vunpack.c.l.b16 %v530
        %v563 = vunpack.c.l.b16 %v531
        %v564 = vunpack.c.l.b16 %v532
        %v565 = vunpack.c.l.b16 %v533
        %v566 = vunpack.c.l.b16 %v534
        %v567 = vunpack.c.l.b16 %v535
        %v568 = vunpack.c.l.b16 %v536
        %v569 = vunpack.c.l.b16 %v537
        %v570 = vunpack.c.l.b16 %v538
        %v571 = vunpack.c.l.b16 %v539
        %v572 = vpack.c.b16 %v557, %v556
        %v573 = vpack.c.b16 %v559, %v558
        %v574 = vpack.c.b16 %v561, %v560
        %v575 = vpack.c.b16 %v563, %v562
        %v576 = vpack.c.b16 %v565, %v564
        %v577 = vpack.c.b16 %v567, %v566
        %v578 = vpack.c.b16 %v569, %v568
        %v579 = vpack.c.b16 %v571, %v570
        %588 = vmatpush.bf16.msra.mxu0 %v579
        %589 = vmatpush.bf16.msra.mxu0 %v578
        %590 = vmatpush.bf16.msra.mxu0 %v577
        %591 = vmatpush.bf16.msra.mxu0 %v576
        %592 = vmatpush.bf16.msra.mxu0 %v575
        %593 = vmatpush.bf16.msra.mxu0 %v574
        %594 = vmatpush.bf16.msra.mxu0 %v573
        %595 = vmatpush.bf16.msra.mxu0 %v572
        %596 = vmatmul.bf16.gmra.mxu0 %v516
        %v597 = vpop.f32.mrf.mxu0
        %v598 = vadd.f32 0.0, %v597
        %v599 = vpop.f32.mrf.mxu0
        %v600 = vadd.f32 0.0, %v599
        %601 = vmatmul.bf16.gmra.mxu0 %v517
        %v602 = vpop.f32.mrf.mxu0
        %v603 = vadd.f32 0.0, %v602
        %v604 = vpop.f32.mrf.mxu0
        %v605 = vadd.f32 0.0, %v604
        %606 = vmatmul.bf16.gmra.mxu0 %v518
        %v607 = vpop.f32.mrf.mxu0
        %v608 = vadd.f32 0.0, %v607
        %v609 = vpop.f32.mrf.mxu0
        %v610 = vadd.f32 0.0, %v609
        %611 = vmatmul.bf16.gmra.mxu0 %v519
        %v612 = vpop.f32.mrf.mxu0
        %v613 = vadd.f32 0.0, %v612
        %v614 = vpop.f32.mrf.mxu0
        %v615 = vadd.f32 0.0, %v614
        %616 = vmatmul.bf16.gmra.mxu0 %v520
        %v617 = vpop.f32.mrf.mxu0
        %v618 = vadd.f32 0.0, %v617
        %v619 = vpop.f32.mrf.mxu0
        %v620 = vadd.f32 0.0, %v619
        %621 = vmatmul.bf16.gmra.mxu0 %v521
        %v622 = vpop.f32.mrf.mxu0
        %v623 = vadd.f32 0.0, %v622
        %v624 = vpop.f32.mrf.mxu0
        %v625 = vadd.f32 0.0, %v624
        %626 = vmatmul.bf16.gmra.mxu0 %v522
        %v627 = vpop.f32.mrf.mxu0
        %v628 = vadd.f32 0.0, %v627
        %v629 = vpop.f32.mrf.mxu0
        %v630 = vadd.f32 0.0, %v629
        %631 = vmatmul.bf16.gmra.mxu0 %v523
        %v632 = vpop.f32.mrf.mxu0
        %v633 = vadd.f32 0.0, %v632
        %v634 = vpop.f32.mrf.mxu0
        %v635 = vadd.f32 0.0, %v634
        %636 = vdwg.mxu0
        %v637 = vld [vmem:[#allocation2] sm:$0xf]
        %v638 = vld [vmem:[#allocation2 + $0x4] sm:$0xf]
        %v639 = vld [vmem:[#allocation2 + $0x8] sm:$0xf]
        %v640 = vld [vmem:[#allocation2 + $0xc] sm:$0xf]
        %v641 = vld [vmem:[#allocation2 + $0x10] sm:$0xf]
        %v642 = vld [vmem:[#allocation2 + $0x14] sm:$0xf]
        %v643 = vld [vmem:[#allocation2 + $0x18] sm:$0xf]
        %v644 = vld [vmem:[#allocation2 + $0x1c] sm:$0xf]
        %v645 = vld [vmem:[#allocation2 + $0x20] sm:$0xf]
        %v646 = vld [vmem:[#allocation2 + $0x24] sm:$0xf]
        %v647 = vld [vmem:[#allocation2 + $0x28] sm:$0xf]
        %v648 = vld [vmem:[#allocation2 + $0x2c] sm:$0xf]
        %v649 = vld [vmem:[#allocation2 + $0x30] sm:$0xf]
        %v650 = vld [vmem:[#allocation2 + $0x34] sm:$0xf]
        %v651 = vld [vmem:[#allocation2 + $0x38] sm:$0xf]
        %v652 = vld [vmem:[#allocation2 + $0x3c] sm:$0xf]
        %v653 = vpack.c.bf16 %v600, %v598
        %v654 = vpack.c.bf16 %v605, %v603
        %v655 = vpack.c.bf16 %v610, %v608
        %v656 = vpack.c.bf16 %v615, %v613
        %v657 = vpack.c.bf16 %v620, %v618
        %v658 = vpack.c.bf16 %v625, %v623
        %v659 = vpack.c.bf16 %v630, %v628
        %v660 = vpack.c.bf16 %v635, %v633
        %v661 = vld [vmem:[#allocation4] sm:$0xff]
        %v662 = vld [vmem:[#allocation4 + $0x8] sm:$0xff]
        %v663 = vld [vmem:[#allocation4 + $0x10] sm:$0xff]
        %v664 = vld [vmem:[#allocation4 + $0x18] sm:$0xff]
        %v665 = vld [vmem:[#allocation4 + $0x20] sm:$0xff]
        %v666 = vld [vmem:[#allocation4 + $0x28] sm:$0xff]
        %v667 = vld [vmem:[#allocation4 + $0x30] sm:$0xff]
        %v668 = vld [vmem:[#allocation4 + $0x38] sm:$0xff]
        %v669 = vld [vmem:[#allocation4 + $0x40] sm:$0xff]
        %v670 = vld [vmem:[#allocation4 + $0x48] sm:$0xff]
        %v671 = vld [vmem:[#allocation4 + $0x50] sm:$0xff]
        %v672 = vld [vmem:[#allocation4 + $0x58] sm:$0xff]
        %v673 = vld [vmem:[#allocation4 + $0x60] sm:$0xff]
        %v674 = vld [vmem:[#allocation4 + $0x68] sm:$0xff]
        %v675 = vld [vmem:[#allocation4 + $0x70] sm:$0xff]
        %v676 = vld [vmem:[#allocation4 + $0x78] sm:$0xff]
        %v693 = vunpack.c.l.b16 %v637
        %v694 = vunpack.c.l.b16 %v638
        %v695 = vunpack.c.l.b16 %v639
        %v696 = vunpack.c.l.b16 %v640
        %v697 = vunpack.c.l.b16 %v641
        %v698 = vunpack.c.l.b16 %v642
        %v699 = vunpack.c.l.b16 %v643
        %v700 = vunpack.c.l.b16 %v644
        %v701 = vunpack.c.l.b16 %v645
        %v702 = vunpack.c.l.b16 %v646
        %v703 = vunpack.c.l.b16 %v647
        %v704 = vunpack.c.l.b16 %v648
        %v705 = vunpack.c.l.b16 %v649
        %v706 = vunpack.c.l.b16 %v650
        %v707 = vunpack.c.l.b16 %v651
        %v708 = vunpack.c.l.b16 %v652
        %v709 = vpack.c.b16 %v694, %v693
        %v710 = vpack.c.b16 %v696, %v695
        %v711 = vpack.c.b16 %v698, %v697
        %v712 = vpack.c.b16 %v700, %v699
        %v713 = vpack.c.b16 %v702, %v701
        %v714 = vpack.c.b16 %v704, %v703
        %v715 = vpack.c.b16 %v706, %v705
        %v716 = vpack.c.b16 %v708, %v707
        %725 = vmatpush.bf16.msra.mxu0 %v660
        %726 = vmatpush.bf16.msra.mxu0 %v659
        %727 = vmatpush.bf16.msra.mxu0 %v658
        %728 = vmatpush.bf16.msra.mxu0 %v657
        %729 = vmatpush.bf16.msra.mxu0 %v656
        %730 = vmatpush.bf16.msra.mxu0 %v655
        %731 = vmatpush.bf16.msra.mxu0 %v654
        %732 = vmatpush.bf16.msra.mxu0 %v653
        %733 = vmatmul.bf16.gmra.mxu0 %v709
        %v734 = vpop.f32.mrf.mxu0
        %v735 = vadd.f32 %v661, %v734
        %v736 = vpop.f32.mrf.mxu0
        %v737 = vadd.f32 %v662, %v736
        %738 = vmatmul.bf16.gmra.mxu0 %v710
        %v739 = vpop.f32.mrf.mxu0
        %v740 = vadd.f32 %v663, %v739
        %v741 = vpop.f32.mrf.mxu0
        %v742 = vadd.f32 %v664, %v741
        %743 = vmatmul.bf16.gmra.mxu0 %v711
        %v744 = vpop.f32.mrf.mxu0
        %v745 = vadd.f32 %v665, %v744
        %v746 = vpop.f32.mrf.mxu0
        %v747 = vadd.f32 %v666, %v746
        %748 = vmatmul.bf16.gmra.mxu0 %v712
        %v749 = vpop.f32.mrf.mxu0
        %v750 = vadd.f32 %v667, %v749
        %v751 = vpop.f32.mrf.mxu0
        %v752 = vadd.f32 %v668, %v751
        %753 = vmatmul.bf16.gmra.mxu0 %v713
        %v754 = vpop.f32.mrf.mxu0
        %v755 = vadd.f32 %v669, %v754
        %v756 = vpop.f32.mrf.mxu0
        %v757 = vadd.f32 %v670, %v756
        %758 = vmatmul.bf16.gmra.mxu0 %v714
        %v759 = vpop.f32.mrf.mxu0
        %v760 = vadd.f32 %v671, %v759
        %v761 = vpop.f32.mrf.mxu0
        %v762 = vadd.f32 %v672, %v761
        %763 = vmatmul.bf16.gmra.mxu0 %v715
        %v764 = vpop.f32.mrf.mxu0
        %v765 = vadd.f32 %v673, %v764
        %v766 = vpop.f32.mrf.mxu0
        %v767 = vadd.f32 %v674, %v766
        %768 = vmatmul.bf16.gmra.mxu0 %v716
        %v769 = vpop.f32.mrf.mxu0
        %v770 = vadd.f32 %v675, %v769
        %v771 = vpop.f32.mrf.mxu0
        %v772 = vadd.f32 %v676, %v771
        %773 = vdwg.mxu0
        %774 = vst [vmem:[#allocation3] sm:$0xff] %v735
        %775 = vst [vmem:[#allocation3 + $0x8] sm:$0xff] %v737
        %776 = vst [vmem:[#allocation3 + $0x10] sm:$0xff] %v740
        %777 = vst [vmem:[#allocation3 + $0x18] sm:$0xff] %v742
        %778 = vst [vmem:[#allocation3 + $0x20] sm:$0xff] %v745
        %779 = vst [vmem:[#allocation3 + $0x28] sm:$0xff] %v747
        %780 = vst [vmem:[#allocation3 + $0x30] sm:$0xff] %v750
        %781 = vst [vmem:[#allocation3 + $0x38] sm:$0xff] %v752
        %782 = vst [vmem:[#allocation3 + $0x40] sm:$0xff] %v755
        %783 = vst [vmem:[#allocation3 + $0x48] sm:$0xff] %v757
        %784 = vst [vmem:[#allocation3 + $0x50] sm:$0xff] %v760
        %785 = vst [vmem:[#allocation3 + $0x58] sm:$0xff] %v762
        %786 = vst [vmem:[#allocation3 + $0x60] sm:$0xff] %v765
        %787 = vst [vmem:[#allocation3 + $0x68] sm:$0xff] %v767
        %788 = vst [vmem:[#allocation3 + $0x70] sm:$0xff] %v770
        %789 = vst [vmem:[#allocation3 + $0x78] sm:$0xff] %v772
        %p790 = scmp.eq.s32.totalorder %s19, 1
        // Predicated region
        $region61: #{tpu_custom_call.1} parent=35 // pred_check
          %p791 = pneg %p790
        $region62: #{tpu_custom_call.1} parent=35 // pred_check_branch
          %793 = sbr.rel (%p791) target = $region64
        $region63: #{tpu_custom_call.1} parent=35 // pred_region
          %v794 = vld [vmem:[#allocation3] sm:$0xff]
          %v795 = vld [vmem:[#allocation3 + $0x8] sm:$0xff]
          %v796 = vld [vmem:[#allocation3 + $0x10] sm:$0xff]
          %v797 = vld [vmem:[#allocation3 + $0x18] sm:$0xff]
          %v798 = vld [vmem:[#allocation3 + $0x20] sm:$0xff]
          %v799 = vld [vmem:[#allocation3 + $0x28] sm:$0xff]
          %v800 = vld [vmem:[#allocation3 + $0x30] sm:$0xff]
          %v801 = vld [vmem:[#allocation3 + $0x38] sm:$0xff]
          %v802 = vld [vmem:[#allocation3 + $0x40] sm:$0xff]
          %v803 = vld [vmem:[#allocation3 + $0x48] sm:$0xff]
          %v804 = vld [vmem:[#allocation3 + $0x50] sm:$0xff]
          %v805 = vld [vmem:[#allocation3 + $0x58] sm:$0xff]
          %v806 = vld [vmem:[#allocation3 + $0x60] sm:$0xff]
          %v807 = vld [vmem:[#allocation3 + $0x68] sm:$0xff]
          %v808 = vld [vmem:[#allocation3 + $0x70] sm:$0xff]
          %v809 = vld [vmem:[#allocation3 + $0x78] sm:$0xff]
          %v810 = vpack.c.bf16 %v795, %v794
          %v811 = vpack.c.bf16 %v797, %v796
          %v812 = vpack.c.bf16 %v799, %v798
          %v813 = vpack.c.bf16 %v801, %v800
          %v814 = vpack.c.bf16 %v803, %v802
          %v815 = vpack.c.bf16 %v805, %v804
          %v816 = vpack.c.bf16 %v807, %v806
          %v817 = vpack.c.bf16 %v809, %v808
          %v818 = vld [vmem:[#allocation12] sm:$0xf]
          %v819 = vld [vmem:[#allocation12 + $0x4] sm:$0xf]
          %v820 = vld [vmem:[#allocation12 + $0x8] sm:$0xf]
          %v821 = vld [vmem:[#allocation12 + $0xc] sm:$0xf]
          %v822 = vld [vmem:[#allocation12 + $0x10] sm:$0xf]
          %v823 = vld [vmem:[#allocation12 + $0x14] sm:$0xf]
          %v824 = vld [vmem:[#allocation12 + $0x18] sm:$0xf]
          %v825 = vld [vmem:[#allocation12 + $0x1c] sm:$0xf]
          %v826 = vld [vmem:[#allocation12 + $0x20] sm:$0xf]
          %v827 = vld [vmem:[#allocation12 + $0x24] sm:$0xf]
          %v828 = vld [vmem:[#allocation12 + $0x28] sm:$0xf]
          %v829 = vld [vmem:[#allocation12 + $0x2c] sm:$0xf]
          %v830 = vld [vmem:[#allocation12 + $0x30] sm:$0xf]
          %v831 = vld [vmem:[#allocation12 + $0x34] sm:$0xf]
          %v832 = vld [vmem:[#allocation12 + $0x38] sm:$0xf]
          %v833 = vld [vmem:[#allocation12 + $0x3c] sm:$0xf]
          %v850 = vunpack.c.l.b16 %v818
          %v851 = vunpack.c.l.b16 %v819
          %v852 = vunpack.c.l.b16 %v820
          %v853 = vunpack.c.l.b16 %v821
          %v854 = vunpack.c.l.b16 %v822
          %v855 = vunpack.c.l.b16 %v823
          %v856 = vunpack.c.l.b16 %v824
          %v857 = vunpack.c.l.b16 %v825
          %v858 = vunpack.c.l.b16 %v826
          %v859 = vunpack.c.l.b16 %v827
          %v860 = vunpack.c.l.b16 %v828
          %v861 = vunpack.c.l.b16 %v829
          %v862 = vunpack.c.l.b16 %v830
          %v863 = vunpack.c.l.b16 %v831
          %v864 = vunpack.c.l.b16 %v832
          %v865 = vunpack.c.l.b16 %v833
          %v866 = vpack.c.b16 %v851, %v850
          %v867 = vpack.c.b16 %v853, %v852
          %v868 = vpack.c.b16 %v855, %v854
          %v869 = vpack.c.b16 %v857, %v856
          %v870 = vpack.c.b16 %v859, %v858
          %v871 = vpack.c.b16 %v861, %v860
          %v872 = vpack.c.b16 %v863, %v862
          %v873 = vpack.c.b16 %v865, %v864
          %882 = vmatpush.bf16.msra.mxu0 %v873
          %883 = vmatpush.bf16.msra.mxu0 %v872
          %884 = vmatpush.bf16.msra.mxu0 %v871
          %885 = vmatpush.bf16.msra.mxu0 %v870
          %886 = vmatpush.bf16.msra.mxu0 %v869
          %887 = vmatpush.bf16.msra.mxu0 %v868
          %888 = vmatpush.bf16.msra.mxu0 %v867
          %889 = vmatpush.bf16.msra.mxu0 %v866
          %890 = vmatmul.bf16.gmra.mxu0 %v810
          %v891 = vpop.f32.mrf.mxu0
          %v892 = vadd.f32 0.0, %v891
          %v893 = vpop.f32.mrf.mxu0
          %v894 = vadd.f32 0.0, %v893
          %895 = vmatmul.bf16.gmra.mxu0 %v811
          %v896 = vpop.f32.mrf.mxu0
          %v897 = vadd.f32 0.0, %v896
          %v898 = vpop.f32.mrf.mxu0
          %v899 = vadd.f32 0.0, %v898
          %900 = vmatmul.bf16.gmra.mxu0 %v812
          %v901 = vpop.f32.mrf.mxu0
          %v902 = vadd.f32 0.0, %v901
          %v903 = vpop.f32.mrf.mxu0
          %v904 = vadd.f32 0.0, %v903
          %905 = vmatmul.bf16.gmra.mxu0 %v813
          %v906 = vpop.f32.mrf.mxu0
          %v907 = vadd.f32 0.0, %v906
          %v908 = vpop.f32.mrf.mxu0
          %v909 = vadd.f32 0.0, %v908
          %910 = vmatmul.bf16.gmra.mxu0 %v814
          %v911 = vpop.f32.mrf.mxu0
          %v912 = vadd.f32 0.0, %v911
          %v913 = vpop.f32.mrf.mxu0
          %v914 = vadd.f32 0.0, %v913
          %915 = vmatmul.bf16.gmra.mxu0 %v815
          %v916 = vpop.f32.mrf.mxu0
          %v917 = vadd.f32 0.0, %v916
          %v918 = vpop.f32.mrf.mxu0
          %v919 = vadd.f32 0.0, %v918
          %920 = vmatmul.bf16.gmra.mxu0 %v816
          %v921 = vpop.f32.mrf.mxu0
          %v922 = vadd.f32 0.0, %v921
          %v923 = vpop.f32.mrf.mxu0
          %v924 = vadd.f32 0.0, %v923
          %925 = vmatmul.bf16.gmra.mxu0 %v817
          %v926 = vpop.f32.mrf.mxu0
          %v927 = vadd.f32 0.0, %v926
          %v928 = vpop.f32.mrf.mxu0
          %v929 = vadd.f32 0.0, %v928
          %930 = vdwg.mxu0
          %931 = vst [vmem:[#allocation13] sm:$0xff] %v892
          %932 = vst [vmem:[#allocation13 + $0x8] sm:$0xff] %v894
          %933 = vst [vmem:[#allocation13 + $0x10] sm:$0xff] %v897
          %934 = vst [vmem:[#allocation13 + $0x18] sm:$0xff] %v899
          %935 = vst [vmem:[#allocation13 + $0x20] sm:$0xff] %v902
          %936 = vst [vmem:[#allocation13 + $0x28] sm:$0xff] %v904
          %937 = vst [vmem:[#allocation13 + $0x30] sm:$0xff] %v907
          %938 = vst [vmem:[#allocation13 + $0x38] sm:$0xff] %v909
          %939 = vst [vmem:[#allocation13 + $0x40] sm:$0xff] %v912
          %940 = vst [vmem:[#allocation13 + $0x48] sm:$0xff] %v914
          %941 = vst [vmem:[#allocation13 + $0x50] sm:$0xff] %v917
          %942 = vst [vmem:[#allocation13 + $0x58] sm:$0xff] %v919
          %943 = vst [vmem:[#allocation13 + $0x60] sm:$0xff] %v922
          %944 = vst [vmem:[#allocation13 + $0x68] sm:$0xff] %v924
          %945 = vst [vmem:[#allocation13 + $0x70] sm:$0xff] %v927
          %946 = vst [vmem:[#allocation13 + $0x78] sm:$0xff] %v929
        $region64: #{tpu_custom_call.1} parent=35 // pred_fallthru
          _
        // Predicated region
        $region65: #{tpu_custom_call.1} parent=35 // pred_check
          %p947 = pneg %p121
        $region66: #{tpu_custom_call.1} parent=35 // pred_check_branch
          %949 = sbr.rel (%p947) target = $region68
        $region67: #{tpu_custom_call.1} parent=35 // pred_region
          %951 = vsyncadd [#allocation8], 0
          %s952 = sshll.u32 [#allocation13], 4
          %s953 = int_to_ptr.vmem [resolvable:$true] %s952
          %s954 = sshll.u32 %s5, 4
          %s955 = int_to_ptr.hbm [resolvable:$true] %s954
          %960 = dma.vmem_to_hbm [thread:$0]  %s953, 2048, %s955, [#allocation8], 128, 128, 8
        $region68: #{tpu_custom_call.1} parent=35 // pred_fallthru
          _
        // Predicated region
        $region69: #{tpu_custom_call.1} parent=35 // pred_check
          %p961 = pneg %p121
        $region70: #{tpu_custom_call.1} parent=35 // pred_check_branch
          %963 = sbr.rel (%p961) target = $region72
        $region71: #{tpu_custom_call.1} parent=35 // pred_region
          %965 = dma.done [#allocation8], 2048
        $region72: #{tpu_custom_call.1} parent=35 // pred_fallthru
          _
      $region36: #{tpu_custom_call.1} parent=5 // pred_fallthru
        _
      %p966 = scmp.le.s32.totalorder 2, %s14
      // Predicated region
      $region73: #{tpu_custom_call.1} parent=5 // pred_check
        %p967 = pneg %p966
      $region74: #{tpu_custom_call.1} parent=5 // pred_check_branch
        %969 = sbr.rel (%p967) target = $region76
      $region75: #{tpu_custom_call.1} parent=5 // pred_region
        %s970 = ssub.s32 %s14, 2
      $region76: #{tpu_custom_call.1} parent=5 // pred_fallthru
        _
    $region6: #{tpu_custom_call.1} parent=1 // loop_footer
      %s18 = sadd.s32 1, %s14
    $region7: #{tpu_custom_call.1} parent=1 // loop_footer_branch
      %13 = sbr.rel target = $region3
    $region8: #{tpu_custom_call.1} parent=1 // loop_exit
      _
    %971 = vsyncpa [#allocation7], 1
    %s972 = scalar_lea.sflag [#allocation7], 1
    %973 = vsyncpa %s972, 1
    %974 = vsyncpa [#allocation10], 1
    %975 = vsyncpa [#allocation8], 1
    %s976 = scalar_lea.sflag [#allocation8], 1
    %977 = vsyncpa %s976, 1
  %978 = vsyncmov [#allocation5]
  %s979 = vpop.sfrf %978
  %p980 = scmp.eq.s32.totalorder %s979, 0
  %p981 = pneg %p980
  %983 = shalt.err (%p981)

</llo_original>
